<compile_context>
chip_gen: v5e
topology: v5e:2x2
jax: 0.10.0
libtpu: 0.0.40
codegen_flags: <defaults>
</compile_context>

<pallas_src>
import math
import numpy as np
import jax
import jax.numpy as jnp
from jax import lax
from jax.experimental import pallas as pl
from jax.experimental.pallas import tpu as pltpu

# ---------------- model dims (small, consistent with the module) ----------------
B = 2            # batch
S = 8            # sequence length
D = 32           # num_hiddens == key/query/value size == ffn_num_input == norm_shape
H = 4            # num_heads
DH = D // H      # per-head dim
FFN = 64         # ffn_num_hiddens
BS = B * S       # flattened tokens
EPS = 1e-5       # LayerNorm eps (PyTorch default)

# packed-weight slab layout (lane dim = 3*D = 96; all row offsets are multiples of 8)
_R_QKV = 0            # rows [0, D)        : [Wq | Wk | Wv]                 (D, 3D)
_R_WO = D             # rows [D, 2D)       : Wo                             (D, D)
_R_W1 = 2 * D         # rows [2D, 3D)      : W1                             (D, FFN)
_R_W2 = 3 * D         # rows [3D, 3D+FFN)  : W2                             (FFN, D)
_R_VEC = 3 * D + FFN  # rows [+0 .. +6)    : g1, be1, g2, be2, b2, b1       (6, *)
_ROWS = _R_VEC + 6


def _layer_norm(x, gamma, beta):
    mu = jnp.mean(x, axis=-1, keepdims=True)
    var = jnp.mean((x - mu) ** 2, axis=-1, keepdims=True)
    return (x - mu) * lax.rsqrt(var + EPS) * gamma + beta


def encoder_block_kernel(x_ref, vl_ref, w_ref, o_ref):
    x = x_ref[...]                                       # (BS, D) f32

    # ---- unpack the pre-packed slab (static, tile-friendly slices; lanes start at 0) ----
    wqkv = w_ref[_R_QKV:_R_QKV + D, :]                   # (D, 3D)
    wo = w_ref[_R_WO:_R_WO + D, 0:D]                     # (D, D)
    w1 = w_ref[_R_W1:_R_W1 + D, 0:FFN]                   # (D, FFN)
    w2 = w_ref[_R_W2:_R_W2 + FFN, 0:D]                   # (FFN, D)
    vecs = w_ref[_R_VEC:_R_VEC + 6, :]                   # (6, 3D)
    g1, be1 = vecs[0:1, :D], vecs[1:2, :D]
    g2, be2 = vecs[2:3, :D], vecs[3:4, :D]
    bb2, bb1 = vecs[4:5, :D], vecs[5:6, :FFN]

    # ---- fused Q/K/V projection: one (BS, D) x (D, 3D) MXU push ----------------------
    qkv = jnp.dot(x, wqkv, preferred_element_type=jnp.float32)          # (BS, 3D)

    # ---- per-row key-index bounds from (B,) valid_lens held in SMEM ------------------
    # TODO(synk): specialised to B == 2 (single select); generalise for larger B.
    vl0 = vl_ref[0]
    vl1 = vl_ref[1]
    row = lax.broadcasted_iota(jnp.int32, (BS, BS), 0)
    col = lax.broadcasted_iota(jnp.int32, (BS, BS), 1)
    lo = jnp.where(row < S, 0, S)
    vl = jnp.where(row < S, vl0, vl1)
    in_batch = (col >= lo) & (col < lo + S)              # same batch as the query row
    in_len = (col >= lo) & (col < lo + vl)               # same batch AND key < valid_len
    # in-batch padding keys get d2l's -1e6; cross-batch keys get -1e30 so they vanish from
    # the softmax even in the degenerate valid_len == 0 case.
    fill = jnp.where(in_batch, jnp.float32(-1e6), jnp.float32(-1e30))

    # ---- per-head attention, fully in vregs (no VMEM scratch round-trip) -------------
    scale = 1.0 / math.sqrt(DH)
    ctx = []
    for h in range(H):                                   # static, unrolled (H = 4)
        q_h = qkv[:, h * DH:(h + 1) * DH]                # (BS, DH)
        k_h = qkv[:, D + h * DH:D + (h + 1) * DH]        # (BS, DH)
        v_h = qkv[:, 2 * D + h * DH:2 * D + (h + 1) * DH]
        s = lax.dot_general(q_h, k_h, (((1,), (1,)), ((), ())),
                            preferred_element_type=jnp.float32) * scale  # (BS, BS)
        s = jnp.where(in_len, s, fill)
        s = s - jnp.max(s, axis=-1, keepdims=True)
        p = jnp.exp(s)
        p = p / jnp.sum(p, axis=-1, keepdims=True)       # exact division (no approx recip)
        ctx.append(jnp.dot(p, v_h, preferred_element_type=jnp.float32))  # (BS, DH)

    # ---- output projection: one contraction on the lane-concatenated head contexts ----
    attn = jnp.dot(jnp.concatenate(ctx, axis=1), wo,
                   preferred_element_type=jnp.float32)   # (BS, D)

    # ---- AddNorm 1 ---------------------------------------------------------------------
    # TODO(synk): train-mode dropout not implemented; eval mode => dropout is identity.
    y = _layer_norm(attn + x, g1, be1)

    # ---- position-wise FFN + AddNorm 2 -------------------------------------------------
    hdn = jnp.maximum(jnp.dot(y, w1, preferred_element_type=jnp.float32) + bb1, 0.0)
    ffn = jnp.dot(hdn, w2, preferred_element_type=jnp.float32) + bb2
    o_ref[...] = _layer_norm(ffn + y, g2, be2).astype(o_ref.dtype)


def pack_encoder_block_params(params):
    """Pre-pack all weights / small vectors into one (166, 96) f32 slab. Call once."""
    (wq, wk, wv, wo, g1, be1, w1, bb1, w2, bb2, g2, be2) = params
    lanes = 3 * D
    padm = lambda m: jnp.pad(m, ((0, 0), (0, lanes - m.shape[1])))
    padv = lambda v: jnp.pad(v, (0, lanes - v.shape[0]))[None, :]
    return jnp.concatenate(
        [jnp.concatenate([wq, wk, wv], axis=1),          # (D, 3D) fused QKV projection
         padm(wo), padm(w1), padm(w2),
         padv(g1), padv(be1), padv(g2), padv(be2), padv(bb2), padv(bb1)],
        axis=0).astype(jnp.float32)                      # (_ROWS, 3D)


@jax.jit
def encoder_block(x, valid_lens, wpack):
    x2d = x.reshape(BS, D)                               # one lane-tile-friendly block
    vmem = pl.BlockSpec(memory_space=pltpu.MemorySpace.VMEM)
    smem = pl.BlockSpec(memory_space=pltpu.MemorySpace.SMEM)
    out2d = pl.pallas_call(
        encoder_block_kernel,
        out_shape=jax.ShapeDtypeStruct((BS, D), jnp.float32),
        in_specs=[vmem, smem, vmem],
        out_specs=vmem,
    )(x2d, valid_lens.astype(jnp.int32), wpack)
    return out2d.reshape(B, S, D)


# -------------------------- pure-JAX reference -----------------------------------
def encoder_block_ref(x, valid_lens, params):
    (wq, wk, wv, wo, g1, be1, w1, bb1, w2, bb2, g2, be2) = params
    q, k, v = x @ wq, x @ wk, x @ wv
    split = lambda t: t.reshape(B, S, H, DH).transpose(0, 2, 1, 3)
    qh, kh, vh = split(q), split(k), split(v)
    scores = jnp.einsum("bhqd,bhkd->bhqk", qh, kh) / math.sqrt(DH)
    mask = jnp.arange(S)[None, None, None, :] < valid_lens[:, None, None, None]
    scores = jnp.where(mask, scores, -1e6)
    p = jax.nn.softmax(scores, axis=-1)
    o = jnp.einsum("bhqk,bhkd->bhqd", p, vh)
    attn = o.transpose(0, 2, 1, 3).reshape(B, S, D) @ wo
    y = _layer_norm(attn + x, g1, be1)
    ffn = jnp.maximum(y @ w1 + bb1, 0.0) @ w2 + bb2
    return _layer_norm(ffn + y, g2, be2)


if __name__ == "__main__":
    key = jax.random.PRNGKey(0)
    keys = jax.random.split(key, 8)

    x = jax.random.normal(keys[0], (B, S, D), dtype=jnp.float32)
    valid_lens = jnp.array([3, 6], dtype=jnp.int32)

    scale = 0.1
    wq = scale * jax.random.normal(keys[1], (D, D), dtype=jnp.float32)
    wk = scale * jax.random.normal(keys[2], (D, D), dtype=jnp.float32)
    wv = scale * jax.random.normal(keys[3], (D, D), dtype=jnp.float32)
    wo = scale * jax.random.normal(keys[4], (D, D), dtype=jnp.float32)    # use_bias=False
    g1 = jnp.ones((D,), jnp.float32)
    be1 = jnp.zeros((D,), jnp.float32)
    w1 = scale * jax.random.normal(keys[5], (D, FFN), dtype=jnp.float32)
    bb1 = 0.01 * jnp.ones((FFN,), jnp.float32)
    w2 = scale * jax.random.normal(keys[6], (FFN, D), dtype=jnp.float32)
    bb2 = 0.01 * jnp.ones((D,), jnp.float32)
    g2 = jnp.ones((D,), jnp.float32)
    be2 = jnp.zeros((D,), jnp.float32)

    params = (wq, wk, wv, wo, g1, be1, w1, bb1, w2, bb2, g2, be2)
    wpack = pack_encoder_block_params(params)            # packed ONCE, reused every call

    out = jax.block_until_ready(encoder_block(x, valid_lens, wpack))

    # reference in full f32 matmul precision to match the kernel's f32 MXU math;
    # exact softmax division lets the tolerance tighten from 1e-3 to 1e-4.
    with jax.default_matmul_precision("highest"):
        ref = encoder_block_ref(x, valid_lens, params)

    np.testing.assert_allclose(np.asarray(out), np.asarray(ref), rtol=1e-4, atol=1e-4)

    print("KERNEL_OK")
</pallas_src>

<mosaic_0001>
module attributes {stable_mosaic.version = 11 : i64} {
  func.func @encoder_block_kernel(%arg0: memref<16x32xf32, #tpu.memory_space<vmem>>, %arg1: memref<2xi32, #tpu.memory_space<smem>>, %arg2: memref<166x96xf32, #tpu.memory_space<vmem>>, %arg3: memref<16x32xf32, #tpu.memory_space<vmem>>) attributes {dimension_semantics = [], scalar_prefetch = 0 : i64, scratch_operands = 0 : i64, tpu.core_type = #tpu.core_type<tc>} {
    %c0 = arith.constant 0 : index
    %c0_0 = arith.constant 0 : index
    %0 = vector.load %arg0[%c0, %c0_0] : memref<16x32xf32, #tpu.memory_space<vmem>>, vector<16x32xf32>
    %c0_1 = arith.constant 0 : index
    %c0_2 = arith.constant 0 : index
    %1 = vector.load %arg2[%c0_1, %c0_2] : memref<166x96xf32, #tpu.memory_space<vmem>>, vector<32x96xf32>
    %c32 = arith.constant 32 : index
    %c0_3 = arith.constant 0 : index
    %2 = vector.load %arg2[%c32, %c0_3] : memref<166x96xf32, #tpu.memory_space<vmem>>, vector<32x32xf32>
    %c64 = arith.constant 64 : index
    %c0_4 = arith.constant 0 : index
    %3 = vector.load %arg2[%c64, %c0_4] : memref<166x96xf32, #tpu.memory_space<vmem>>, vector<32x64xf32>
    %c96 = arith.constant 96 : index
    %c0_5 = arith.constant 0 : index
    %4 = vector.load %arg2[%c96, %c0_5] : memref<166x96xf32, #tpu.memory_space<vmem>>, vector<64x32xf32>
    %c160 = arith.constant 160 : index
    %c0_6 = arith.constant 0 : index
    %5 = vector.load %arg2[%c160, %c0_6] : memref<166x96xf32, #tpu.memory_space<vmem>>, vector<6x96xf32>
    %6 = vector.extract_strided_slice %5 {offsets = [0, 0], sizes = [1, 32], strides = [1, 1]} : vector<6x96xf32> to vector<1x32xf32>
    %7 = vector.extract_strided_slice %5 {offsets = [1, 0], sizes = [1, 32], strides = [1, 1]} : vector<6x96xf32> to vector<1x32xf32>
    %8 = vector.extract_strided_slice %5 {offsets = [2, 0], sizes = [1, 32], strides = [1, 1]} : vector<6x96xf32> to vector<1x32xf32>
    %9 = vector.extract_strided_slice %5 {offsets = [3, 0], sizes = [1, 32], strides = [1, 1]} : vector<6x96xf32> to vector<1x32xf32>
    %10 = vector.extract_strided_slice %5 {offsets = [4, 0], sizes = [1, 32], strides = [1, 1]} : vector<6x96xf32> to vector<1x32xf32>
    %11 = vector.extract_strided_slice %5 {offsets = [5, 0], sizes = [1, 64], strides = [1, 1]} : vector<6x96xf32> to vector<1x64xf32>
    %cst = arith.constant dense<0.000000e+00> : vector<16x96xf32>
    %12 = tpu.matmul %0, %1, %cst {dimension_numbers = #tpu.dot_dimension_numbers<[1], [0], [0], [1], [0, 0, 1, 1], [], []>} : vector<16x32xf32>, vector<32x96xf32>, vector<16x96xf32> -> vector<16x96xf32>
    %c0_7 = arith.constant 0 : index
    %13 = memref.load %arg1[%c0_7] : memref<2xi32, #tpu.memory_space<smem>>
    %c1 = arith.constant 1 : index
    %14 = memref.load %arg1[%c1] : memref<2xi32, #tpu.memory_space<smem>>
    %15 = tpu.iota {dimensions = array<i32: 0>} : vector<16x16xi32>
    %16 = tpu.iota {dimensions = array<i32: 1>} : vector<16x16xi32>
    %c8_i32 = arith.constant 8 : i32
    %17 = vector.broadcast %c8_i32 : i32 to vector<16x16xi32>
    %18 = arith.cmpi slt, %15, %17 : vector<16x16xi32>
    %c0_i32 = arith.constant 0 : i32
    %c8_i32_8 = arith.constant 8 : i32
    %19 = vector.broadcast %c0_i32 : i32 to vector<16x16xi32>
    %20 = vector.broadcast %c8_i32_8 : i32 to vector<16x16xi32>
    %21 = arith.select %18, %19, %20 : vector<16x16xi1>, vector<16x16xi32>
    %c8_i32_9 = arith.constant 8 : i32
    %22 = vector.broadcast %c8_i32_9 : i32 to vector<16x16xi32>
    %23 = arith.cmpi slt, %15, %22 : vector<16x16xi32>
    %24 = vector.broadcast %13 : i32 to vector<16x16xi32>
    %25 = vector.broadcast %14 : i32 to vector<16x16xi32>
    %26 = arith.select %23, %24, %25 : vector<16x16xi1>, vector<16x16xi32>
    %27 = arith.cmpi sge, %16, %21 : vector<16x16xi32>
    %c8_i32_10 = arith.constant 8 : i32
    %28 = vector.broadcast %c8_i32_10 : i32 to vector<16x16xi32>
    %29 = arith.addi %21, %28 : vector<16x16xi32>
    %30 = arith.cmpi slt, %16, %29 : vector<16x16xi32>
    %31 = arith.andi %27, %30 : vector<16x16xi1>
    %32 = arith.cmpi sge, %16, %21 : vector<16x16xi32>
    %33 = arith.addi %21, %26 : vector<16x16xi32>
    %34 = arith.cmpi slt, %16, %33 : vector<16x16xi32>
    %35 = arith.andi %32, %34 : vector<16x16xi1>
    %cst_11 = arith.constant -1.000000e+06 : f32
    %cst_12 = arith.constant -1.000000e+30 : f32
    %36 = vector.broadcast %cst_11 : f32 to vector<16x16xf32>
    %37 = vector.broadcast %cst_12 : f32 to vector<16x16xf32>
    %38 = arith.select %31, %36, %37 : vector<16x16xi1>, vector<16x16xf32>
    %39 = vector.extract_strided_slice %12 {offsets = [0, 0], sizes = [16, 8], strides = [1, 1]} : vector<16x96xf32> to vector<16x8xf32>
    %40 = vector.extract_strided_slice %12 {offsets = [0, 32], sizes = [16, 8], strides = [1, 1]} : vector<16x96xf32> to vector<16x8xf32>
    %41 = vector.extract_strided_slice %12 {offsets = [0, 64], sizes = [16, 8], strides = [1, 1]} : vector<16x96xf32> to vector<16x8xf32>
    %cst_13 = arith.constant dense<0.000000e+00> : vector<16x16xf32>
    %42 = tpu.matmul %39, %40, %cst_13 {dimension_numbers = #tpu.dot_dimension_numbers<[1], [1], [0], [0], [0, 0, 1, 0], [], []>} : vector<16x8xf32>, vector<16x8xf32>, vector<16x16xf32> -> vector<16x16xf32>
    %cst_14 = arith.constant 0.353553385 : f32
    %43 = vector.broadcast %cst_14 : f32 to vector<16x16xf32>
    %44 = arith.mulf %42, %43 : vector<16x16xf32>
    %45 = arith.select %35, %44, %38 : vector<16x16xi1>, vector<16x16xf32>
    %cst_15 = arith.constant dense<0xFF800000> : vector<16xf32>
    %46 = vector.multi_reduction <maximumf>, %45, %cst_15 [1] : vector<16x16xf32> to vector<16xf32>
    %47 = vector.shape_cast %46 : vector<16xf32> to vector<16x1xf32>
    %48 = vector.broadcast %47 : vector<16x1xf32> to vector<16x16xf32>
    %49 = arith.subf %45, %48 : vector<16x16xf32>
    %50 = math.exp %49 : vector<16x16xf32>
    %cst_16 = arith.constant dense<0.000000e+00> : vector<16xf32>
    %51 = vector.multi_reduction <add>, %50, %cst_16 [1] : vector<16x16xf32> to vector<16xf32>
    %52 = vector.shape_cast %51 : vector<16xf32> to vector<16x1xf32>
    %53 = vector.broadcast %52 : vector<16x1xf32> to vector<16x16xf32>
    %54 = arith.divf %50, %53 : vector<16x16xf32>
    %cst_17 = arith.constant dense<0.000000e+00> : vector<16x8xf32>
    %55 = tpu.matmul %54, %41, %cst_17 {dimension_numbers = #tpu.dot_dimension_numbers<[1], [0], [0], [1], [0, 0, 1, 1], [], []>} : vector<16x16xf32>, vector<16x8xf32>, vector<16x8xf32> -> vector<16x8xf32>
    %56 = vector.extract_strided_slice %12 {offsets = [0, 8], sizes = [16, 8], strides = [1, 1]} : vector<16x96xf32> to vector<16x8xf32>
    %57 = vector.extract_strided_slice %12 {offsets = [0, 40], sizes = [16, 8], strides = [1, 1]} : vector<16x96xf32> to vector<16x8xf32>
    %58 = vector.extract_strided_slice %12 {offsets = [0, 72], sizes = [16, 8], strides = [1, 1]} : vector<16x96xf32> to vector<16x8xf32>
    %cst_18 = arith.constant dense<0.000000e+00> : vector<16x16xf32>
    %59 = tpu.matmul %56, %57, %cst_18 {dimension_numbers = #tpu.dot_dimension_numbers<[1], [1], [0], [0], [0, 0, 1, 0], [], []>} : vector<16x8xf32>, vector<16x8xf32>, vector<16x16xf32> -> vector<16x16xf32>
    %cst_19 = arith.constant 0.353553385 : f32
    %60 = vector.broadcast %cst_19 : f32 to vector<16x16xf32>
    %61 = arith.mulf %59, %60 : vector<16x16xf32>
    %62 = arith.select %35, %61, %38 : vector<16x16xi1>, vector<16x16xf32>
    %cst_20 = arith.constant dense<0xFF800000> : vector<16xf32>
    %63 = vector.multi_reduction <maximumf>, %62, %cst_20 [1] : vector<16x16xf32> to vector<16xf32>
    %64 = vector.shape_cast %63 : vector<16xf32> to vector<16x1xf32>
    %65 = vector.broadcast %64 : vector<16x1xf32> to vector<16x16xf32>
    %66 = arith.subf %62, %65 : vector<16x16xf32>
    %67 = math.exp %66 : vector<16x16xf32>
    %cst_21 = arith.constant dense<0.000000e+00> : vector<16xf32>
    %68 = vector.multi_reduction <add>, %67, %cst_21 [1] : vector<16x16xf32> to vector<16xf32>
    %69 = vector.shape_cast %68 : vector<16xf32> to vector<16x1xf32>
    %70 = vector.broadcast %69 : vector<16x1xf32> to vector<16x16xf32>
    %71 = arith.divf %67, %70 : vector<16x16xf32>
    %cst_22 = arith.constant dense<0.000000e+00> : vector<16x8xf32>
    %72 = tpu.matmul %71, %58, %cst_22 {dimension_numbers = #tpu.dot_dimension_numbers<[1], [0], [0], [1], [0, 0, 1, 1], [], []>} : vector<16x16xf32>, vector<16x8xf32>, vector<16x8xf32> -> vector<16x8xf32>
    %73 = vector.extract_strided_slice %12 {offsets = [0, 16], sizes = [16, 8], strides = [1, 1]} : vector<16x96xf32> to vector<16x8xf32>
    %74 = vector.extract_strided_slice %12 {offsets = [0, 48], sizes = [16, 8], strides = [1, 1]} : vector<16x96xf32> to vector<16x8xf32>
    %75 = vector.extract_strided_slice %12 {offsets = [0, 80], sizes = [16, 8], strides = [1, 1]} : vector<16x96xf32> to vector<16x8xf32>
    %cst_23 = arith.constant dense<0.000000e+00> : vector<16x16xf32>
    %76 = tpu.matmul %73, %74, %cst_23 {dimension_numbers = #tpu.dot_dimension_numbers<[1], [1], [0], [0], [0, 0, 1, 0], [], []>} : vector<16x8xf32>, vector<16x8xf32>, vector<16x16xf32> -> vector<16x16xf32>
    %cst_24 = arith.constant 0.353553385 : f32
    %77 = vector.broadcast %cst_24 : f32 to vector<16x16xf32>
    %78 = arith.mulf %76, %77 : vector<16x16xf32>
    %79 = arith.select %35, %78, %38 : vector<16x16xi1>, vector<16x16xf32>
    %cst_25 = arith.constant dense<0xFF800000> : vector<16xf32>
    %80 = vector.multi_reduction <maximumf>, %79, %cst_25 [1] : vector<16x16xf32> to vector<16xf32>
    %81 = vector.shape_cast %80 : vector<16xf32> to vector<16x1xf32>
    %82 = vector.broadcast %81 : vector<16x1xf32> to vector<16x16xf32>
    %83 = arith.subf %79, %82 : vector<16x16xf32>
    %84 = math.exp %83 : vector<16x16xf32>
    %cst_26 = arith.constant dense<0.000000e+00> : vector<16xf32>
    %85 = vector.multi_reduction <add>, %84, %cst_26 [1] : vector<16x16xf32> to vector<16xf32>
    %86 = vector.shape_cast %85 : vector<16xf32> to vector<16x1xf32>
    %87 = vector.broadcast %86 : vector<16x1xf32> to vector<16x16xf32>
    %88 = arith.divf %84, %87 : vector<16x16xf32>
    %cst_27 = arith.constant dense<0.000000e+00> : vector<16x8xf32>
    %89 = tpu.matmul %88, %75, %cst_27 {dimension_numbers = #tpu.dot_dimension_numbers<[1], [0], [0], [1], [0, 0, 1, 1], [], []>} : vector<16x16xf32>, vector<16x8xf32>, vector<16x8xf32> -> vector<16x8xf32>
    %90 = vector.extract_strided_slice %12 {offsets = [0, 24], sizes = [16, 8], strides = [1, 1]} : vector<16x96xf32> to vector<16x8xf32>
    %91 = vector.extract_strided_slice %12 {offsets = [0, 56], sizes = [16, 8], strides = [1, 1]} : vector<16x96xf32> to vector<16x8xf32>
    %92 = vector.extract_strided_slice %12 {offsets = [0, 88], sizes = [16, 8], strides = [1, 1]} : vector<16x96xf32> to vector<16x8xf32>
    %cst_28 = arith.constant dense<0.000000e+00> : vector<16x16xf32>
    %93 = tpu.matmul %90, %91, %cst_28 {dimension_numbers = #tpu.dot_dimension_numbers<[1], [1], [0], [0], [0, 0, 1, 0], [], []>} : vector<16x8xf32>, vector<16x8xf32>, vector<16x16xf32> -> vector<16x16xf32>
    %cst_29 = arith.constant 0.353553385 : f32
    %94 = vector.broadcast %cst_29 : f32 to vector<16x16xf32>
    %95 = arith.mulf %93, %94 : vector<16x16xf32>
    %96 = arith.select %35, %95, %38 : vector<16x16xi1>, vector<16x16xf32>
    %cst_30 = arith.constant dense<0xFF800000> : vector<16xf32>
    %97 = vector.multi_reduction <maximumf>, %96, %cst_30 [1] : vector<16x16xf32> to vector<16xf32>
    %98 = vector.shape_cast %97 : vector<16xf32> to vector<16x1xf32>
    %99 = vector.broadcast %98 : vector<16x1xf32> to vector<16x16xf32>
    %100 = arith.subf %96, %99 : vector<16x16xf32>
    %101 = math.exp %100 : vector<16x16xf32>
    %cst_31 = arith.constant dense<0.000000e+00> : vector<16xf32>
    %102 = vector.multi_reduction <add>, %101, %cst_31 [1] : vector<16x16xf32> to vector<16xf32>
    %103 = vector.shape_cast %102 : vector<16xf32> to vector<16x1xf32>
    %104 = vector.broadcast %103 : vector<16x1xf32> to vector<16x16xf32>
    %105 = arith.divf %101, %104 : vector<16x16xf32>
    %cst_32 = arith.constant dense<0.000000e+00> : vector<16x8xf32>
    %106 = tpu.matmul %105, %92, %cst_32 {dimension_numbers = #tpu.dot_dimension_numbers<[1], [0], [0], [1], [0, 0, 1, 1], [], []>} : vector<16x16xf32>, vector<16x8xf32>, vector<16x8xf32> -> vector<16x8xf32>
    %107 = tpu.concatenate %55, %72, %89, %106 in 1 : vector<16x8xf32>, vector<16x8xf32>, vector<16x8xf32>, vector<16x8xf32> -> vector<16x32xf32>
    %cst_33 = arith.constant dense<0.000000e+00> : vector<16x32xf32>
    %108 = tpu.matmul %107, %2, %cst_33 {dimension_numbers = #tpu.dot_dimension_numbers<[1], [0], [0], [1], [0, 0, 1, 1], [], []>} : vector<16x32xf32>, vector<32x32xf32>, vector<16x32xf32> -> vector<16x32xf32>
    %109 = arith.addf %108, %0 : vector<16x32xf32>
    %cst_34 = arith.constant dense<0.000000e+00> : vector<16xf32>
    %110 = vector.multi_reduction <add>, %109, %cst_34 [1] : vector<16x32xf32> to vector<16xf32>
    %111 = vector.shape_cast %110 : vector<16xf32> to vector<16x1xf32>
    %cst_35 = arith.constant 3.200000e+01 : f32
    %112 = vector.broadcast %cst_35 : f32 to vector<16x1xf32>
    %113 = arith.divf %111, %112 : vector<16x1xf32>
    %114 = vector.broadcast %113 : vector<16x1xf32> to vector<16x32xf32>
    %115 = arith.subf %109, %114 : vector<16x32xf32>
    %116 = arith.mulf %115, %115 : vector<16x32xf32>
    %cst_36 = arith.constant dense<0.000000e+00> : vector<16xf32>
    %117 = vector.multi_reduction <add>, %116, %cst_36 [1] : vector<16x32xf32> to vector<16xf32>
    %118 = vector.shape_cast %117 : vector<16xf32> to vector<16x1xf32>
    %cst_37 = arith.constant 3.200000e+01 : f32
    %119 = vector.broadcast %cst_37 : f32 to vector<16x1xf32>
    %120 = arith.divf %118, %119 : vector<16x1xf32>
    %121 = vector.broadcast %113 : vector<16x1xf32> to vector<16x32xf32>
    %122 = arith.subf %109, %121 : vector<16x32xf32>
    %cst_38 = arith.constant 9.99999974E-6 : f32
    %123 = vector.broadcast %cst_38 : f32 to vector<16x1xf32>
    %124 = arith.addf %120, %123 : vector<16x1xf32>
    %125 = math.rsqrt %124 : vector<16x1xf32>
    %126 = vector.broadcast %125 : vector<16x1xf32> to vector<16x32xf32>
    %127 = arith.mulf %122, %126 : vector<16x32xf32>
    %128 = vector.broadcast %6 : vector<1x32xf32> to vector<16x32xf32>
    %129 = arith.mulf %127, %128 : vector<16x32xf32>
    %130 = vector.broadcast %7 : vector<1x32xf32> to vector<16x32xf32>
    %131 = arith.addf %129, %130 : vector<16x32xf32>
    %cst_39 = arith.constant dense<0.000000e+00> : vector<16x64xf32>
    %132 = tpu.matmul %131, %3, %cst_39 {dimension_numbers = #tpu.dot_dimension_numbers<[1], [0], [0], [1], [0, 0, 1, 1], [], []>} : vector<16x32xf32>, vector<32x64xf32>, vector<16x64xf32> -> vector<16x64xf32>
    %133 = vector.broadcast %11 : vector<1x64xf32> to vector<16x64xf32>
    %134 = arith.addf %132, %133 : vector<16x64xf32>
    %cst_40 = arith.constant 0.000000e+00 : f32
    %135 = vector.broadcast %cst_40 : f32 to vector<16x64xf32>
    %136 = arith.maximumf %134, %135 : vector<16x64xf32>
    %cst_41 = arith.constant dense<0.000000e+00> : vector<16x32xf32>
    %137 = tpu.matmul %136, %4, %cst_41 {dimension_numbers = #tpu.dot_dimension_numbers<[1], [0], [0], [1], [0, 0, 1, 1], [], []>} : vector<16x64xf32>, vector<64x32xf32>, vector<16x32xf32> -> vector<16x32xf32>
    %138 = vector.broadcast %10 : vector<1x32xf32> to vector<16x32xf32>
    %139 = arith.addf %137, %138 : vector<16x32xf32>
    %140 = arith.addf %139, %131 : vector<16x32xf32>
    %cst_42 = arith.constant dense<0.000000e+00> : vector<16xf32>
    %141 = vector.multi_reduction <add>, %140, %cst_42 [1] : vector<16x32xf32> to vector<16xf32>
    %142 = vector.shape_cast %141 : vector<16xf32> to vector<16x1xf32>
    %cst_43 = arith.constant 3.200000e+01 : f32
    %143 = vector.broadcast %cst_43 : f32 to vector<16x1xf32>
    %144 = arith.divf %142, %143 : vector<16x1xf32>
    %145 = vector.broadcast %144 : vector<16x1xf32> to vector<16x32xf32>
    %146 = arith.subf %140, %145 : vector<16x32xf32>
    %147 = arith.mulf %146, %146 : vector<16x32xf32>
    %cst_44 = arith.constant dense<0.000000e+00> : vector<16xf32>
    %148 = vector.multi_reduction <add>, %147, %cst_44 [1] : vector<16x32xf32> to vector<16xf32>
    %149 = vector.shape_cast %148 : vector<16xf32> to vector<16x1xf32>
    %cst_45 = arith.constant 3.200000e+01 : f32
    %150 = vector.broadcast %cst_45 : f32 to vector<16x1xf32>
    %151 = arith.divf %149, %150 : vector<16x1xf32>
    %152 = vector.broadcast %144 : vector<16x1xf32> to vector<16x32xf32>
    %153 = arith.subf %140, %152 : vector<16x32xf32>
    %cst_46 = arith.constant 9.99999974E-6 : f32
    %154 = vector.broadcast %cst_46 : f32 to vector<16x1xf32>
    %155 = arith.addf %151, %154 : vector<16x1xf32>
    %156 = math.rsqrt %155 : vector<16x1xf32>
    %157 = vector.broadcast %156 : vector<16x1xf32> to vector<16x32xf32>
    %158 = arith.mulf %153, %157 : vector<16x32xf32>
    %159 = vector.broadcast %8 : vector<1x32xf32> to vector<16x32xf32>
    %160 = arith.mulf %158, %159 : vector<16x32xf32>
    %161 = vector.broadcast %9 : vector<1x32xf32> to vector<16x32xf32>
    %162 = arith.addf %160, %161 : vector<16x32xf32>
    %c0_47 = arith.constant 0 : index
    %c0_48 = arith.constant 0 : index
    %163 = vector.load %arg3[%c0_47, %c0_48] : memref<16x32xf32, #tpu.memory_space<vmem>>, vector<16x32xf32>
    tpu.vector_store %arg3[%c0_47, %c0_48], %162 {strides = array<i32>} : memref<16x32xf32, #tpu.memory_space<vmem>>, vector<16x32xf32>,
    return
  }
}

</mosaic_0001>

<llo_original>
// kernel: encoder_block.1
$region0: #{encoder_block.1}
  #allocation0 [shape = 'u32[]', space=smem, size = 0x4, offset = 0x4, fixed_abs, tag = 'smem constant byte address 0x4 - core index']
  #allocation1 [shape = 'u32[72,128]{1,0:T(1,128)}', space=vmem, size = 0x9000, scoped, tag = 'internal scratch']
  %s0 = inlined_call_operand.hbm [shape: f32[16,32], index: 0, kind: input, shape index: {}]
  %s1 = inlined_call_operand.vmem [shape: s32[2], index: 1, kind: input, shape index: {}]
  %s2 = inlined_call_operand.hbm [shape: f32[166,96], index: 2, kind: input, shape index: {}]
  %s3 = inlined_call_operand.hbm [shape: f32[16,32], index: 3, kind: output, shape index: {}]
  %s4 = sld [smem:[#allocation0]]
  $region34: #{encoder_block.1} parent=0
    _
  %s6 = ssub.s32 1, %s4
  %s7 = scalar_select 0, %s6, %s4
  $region1: #{encoder_block.1} parent=0
    #allocation2 [shape = 'u8[8192]{0}', space=vmem, size = 0x2000, scoped, tag = 'input window, operand 0, single buffered']
    #allocation3 [shape = 's32[1]{0}', space=sflag, size = 0x4, scoped, tag = 'scoped memory for encoder_block.1']
    #allocation4 [shape = 's32[1]{0}', space=sflag, size = 0x4, scoped, tag = 'scoped memory for encoder_block.1']
    #allocation5 [shape = 's32[1]{0}', space=sflag, size = 0x4, scoped, tag = 'scoped memory for encoder_block.1']
    #allocation6 [shape = 'u8[512]{0}', space=smem, size = 0x200, scoped, tag = 'input window, operand 1, single buffered']
    #allocation7 [shape = 'u8[86016]{0}', space=vmem, size = 0x15000, scoped, tag = 'input window, operand 2, single buffered']
    #allocation8 [shape = 's32[1]{0}', space=sflag, size = 0x4, scoped, tag = 'scoped memory for encoder_block.1']
    #allocation9 [shape = 'u8[8192]{0}', space=vmem, size = 0x2000, scoped, tag = 'output window, operand 0, single buffered']
    %8 = vsyncpa [#allocation3], 0
    %9 = vsyncpa [#allocation5], 0
    %10 = vsyncpa [#allocation8], 0
    %11 = vsyncpa [#allocation4], 0
    // Predicated region
    $region2: #{encoder_block.1} parent=1 // pred_check
      _
    $region3: #{encoder_block.1} parent=1 // pred_check_branch
      %13 = sbr.rel (0) target = $region5
    $region4: #{encoder_block.1} parent=1 // pred_region
      %15 = vsyncadd [#allocation3], 0
      %s16 = sshll.u32 %s0, 4
      %s17 = int_to_ptr.hbm [resolvable:$true] %s16
      %s18 = sshll.u32 [#allocation2], 4
      %s19 = int_to_ptr.vmem [resolvable:$true] %s18
      %24 = dma.hbm_to_vmem [thread:$0]  %s17, 256, %s19, [#allocation3], 128, 128, 8
    $region5: #{encoder_block.1} parent=1 // pred_fallthru
      _
    // Predicated region
    $region6: #{encoder_block.1} parent=1 // pred_check
      _
    $region7: #{encoder_block.1} parent=1 // pred_check_branch
      %26 = sbr.rel (0) target = $region9
    $region8: #{encoder_block.1} parent=1 // pred_region
      %28 = vsyncadd [#allocation5], 0
      %s30 = sshll.u32 %s1, 4
      %s31 = int_to_ptr.vmem [resolvable:$true] %s30
      %33 = dma.vmem_to_smem %s31, 16, [#allocation6], [#allocation5]
    $region9: #{encoder_block.1} parent=1 // pred_fallthru
      _
    // Predicated region
    $region10: #{encoder_block.1} parent=1 // pred_check
      _
    $region11: #{encoder_block.1} parent=1 // pred_check_branch
      %35 = sbr.rel (0) target = $region13
    $region12: #{encoder_block.1} parent=1 // pred_region
      %37 = vsyncadd [#allocation8], 0
      %s38 = sshll.u32 %s2, 4
      %s39 = int_to_ptr.hbm [resolvable:$true] %s38
      %s40 = sshll.u32 [#allocation7], 4
      %s41 = int_to_ptr.vmem [resolvable:$true] %s40
      %46 = dma.hbm_to_vmem [thread:$0]  %s39, 2688, %s41, [#allocation8], 128, 128, 8
    $region13: #{encoder_block.1} parent=1 // pred_fallthru
      _
    // Predicated region
    $region14: #{encoder_block.1} parent=1 // pred_check
      _
    $region15: #{encoder_block.1} parent=1 // pred_check_branch
      %48 = sbr.rel (0) target = $region17
    $region16: #{encoder_block.1} parent=1 // pred_region
      %50 = dma.done [#allocation3], 256
    $region17: #{encoder_block.1} parent=1 // pred_fallthru
      _
    // Predicated region
    $region18: #{encoder_block.1} parent=1 // pred_check
      _
    $region19: #{encoder_block.1} parent=1 // pred_check_branch
      %52 = sbr.rel (0) target = $region21
    $region20: #{encoder_block.1} parent=1 // pred_region
      %54 = dma.done [#allocation5], 16
    $region21: #{encoder_block.1} parent=1 // pred_fallthru
      _
    // Predicated region
    $region22: #{encoder_block.1} parent=1 // pred_check
      _
    $region23: #{encoder_block.1} parent=1 // pred_check_branch
      %56 = sbr.rel (0) target = $region25
    $region24: #{encoder_block.1} parent=1 // pred_region
      %58 = dma.done [#allocation8], 2688
    $region25: #{encoder_block.1} parent=1 // pred_fallthru
      _
    %59 = sfence
    %v60 = vld [vmem:[#allocation2] sm:$0xff]
    %v61 = vld [vmem:[#allocation2 + $0x8] sm:$0xff]
    %v62 = vld [vmem:[#allocation7] sm:$0xff]
    %v63 = vld [vmem:[#allocation7 + $0x8] sm:$0xff]
    %v64 = vld [vmem:[#allocation7 + $0x10] sm:$0xff]
    %v65 = vld [vmem:[#allocation7 + $0x18] sm:$0xff]
    %v66 = vld [vmem:[#allocation7 + $0x20] sm:$0xff]
    %v67 = vld [vmem:[#allocation7 + $0x28] sm:$0xff]
    %v68 = vld [vmem:[#allocation7 + $0x30] sm:$0xff]
    %v69 = vld [vmem:[#allocation7 + $0x38] sm:$0xff]
    %v70 = vld [vmem:[#allocation7 + $0x40] sm:$0xff]
    %v71 = vld [vmem:[#allocation7 + $0x48] sm:$0xff]
    %v72 = vld [vmem:[#allocation7 + $0x50] sm:$0xff]
    %v73 = vld [vmem:[#allocation7 + $0x58] sm:$0xff]
    %v74 = vld [vmem:[#allocation7 + $0x60] sm:$0xff]
    %v75 = vld [vmem:[#allocation7 + $0x68] sm:$0xff]
    %v76 = vld [vmem:[#allocation7 + $0x70] sm:$0xff]
    %v77 = vld [vmem:[#allocation7 + $0x78] sm:$0xff]
    %v78 = vld [vmem:[#allocation7 + $0x80] sm:$0xff]
    %v79 = vld [vmem:[#allocation7 + $0x88] sm:$0xff]
    %v80 = vld [vmem:[#allocation7 + $0x90] sm:$0xff]
    %v81 = vld [vmem:[#allocation7 + $0x98] sm:$0xff]
    %v82 = vld [vmem:[#allocation7 + $0xa0] sm:$0x3f]
    %vm83 = vcmask 261120
    %v85 = vsel %vm83, %v60, 0
    %v88 = vsel %vm83, %v61, 0
    %90 = vmatpush.msra.mxu0 0.0
    %91 = vmatpush.msra.mxu0 0.0
    %92 = vmatpush.msra.mxu0 0.0
    %93 = vmatpush.msra.mxu0 0.0
    %94 = vmatpush.msra.mxu0 0.0
    %95 = vmatpush.msra.mxu0 0.0
    %96 = vmatpush.msra.mxu0 0.0
    %97 = vmatpush.msra.mxu0 0.0
    %98 = vmatpush.msra.mxu0 0.0
    %99 = vmatpush.msra.mxu0 0.0
    %100 = vmatpush.msra.mxu0 0.0
    %101 = vmatpush.msra.mxu0 0.0
    %102 = vmatpush.msra.mxu0 %v65
    %103 = vmatpush.msra.mxu0 %v64
    %104 = vmatpush.msra.mxu0 %v63
    %105 = vmatpush.msra.mxu0 %v62
    %106 = vmatmul.f32.gmra.mxu0 %v85
    %v107 = vpop.f32.mrf.mxu0
    %v108 = vadd.f32 0.0, %v107
    %109 = vmatmul.f32.gmra.mxu0 %v88
    %v110 = vpop.f32.mrf.mxu0
    %v111 = vadd.f32 0.0, %v110
    %112 = vdwg.mxu0
    %s113 = sld [smem:[#allocation6]]
    %s114 = sld [smem:[#allocation6 + $0x1]]
    %v115 = vlaneseq
    %v116 = vshrl.u32 %v115, 7
    %v117 = vadd.s32 %v116, 8
    %v118 = vlaneseq
    %v119 = vand.u32 %v118, 127
    %vm120 = vcmp.lt.s32.totalorder %v116, 8
    %vm121 = vcmp.lt.s32.totalorder %v117, 8
    %v122 = vsel %vm120, 0, 8
    %v123 = vsel %vm121, 0, 8
    %v124 = vstv %s113
    %v125 = vstv %s114
    %v126 = vsel %vm120, %v124, %v125
    %v127 = vsel %vm121, %v124, %v125
    %vm128 = vcmp.ge.s32.totalorder %v119, %v122
    %vm129 = vcmp.ge.s32.totalorder %v119, %v123
    %v130 = vadd.s32 %v122, 8
    %v131 = vadd.s32 %v123, 8
    %vm132 = vcmp.lt.s32.totalorder %v119, %v130
    %vm133 = vcmp.lt.s32.totalorder %v119, %v131
    %vm134 = vmand %vm128, %vm132
    %vm135 = vmand %vm129, %vm133
    %v136 = vadd.s32 %v122, %v126
    %v137 = vadd.s32 %v123, %v127
    %vm138 = vcmp.lt.s32.totalorder %v119, %v136
    %vm139 = vcmp.lt.s32.totalorder %v119, %v137
    %vm140 = vmand %vm128, %vm138
    %vm141 = vmand %vm129, %vm139
    %v142 = vsel %vm134, -1000000.0, -1e+30
    %v143 = vsel %vm135, -1000000.0, -1e+30
    %146 = vrot.lane.b32.xlu0 %v108, 96
    %v147 = vpop.permute.xlu0 %146
    %148 = vrot.lane.b32.xlu0 %v111, 96
    %v149 = vpop.permute.xlu0 %148
    %vm150 = vcmask 64512
    %v151 = vsel %vm150, %v108, 0
    %v153 = vsel %vm150, %v111, 0
    %v155 = vsel %vm150, %v147, 0
    %v157 = vsel %vm150, %v149, 0
    %159 = vmatpush.xpose.msra.mxu0 0.0
    %160 = vmatpush.xpose.msra.mxu0 0.0
    %161 = vmatpush.xpose.msra.mxu0 0.0
    %162 = vmatpush.xpose.msra.mxu0 0.0
    %163 = vmatpush.xpose.msra.mxu0 0.0
    %164 = vmatpush.xpose.msra.mxu0 0.0
    %165 = vmatpush.xpose.msra.mxu0 0.0
    %166 = vmatpush.xpose.msra.mxu0 0.0
    %167 = vmatpush.xpose.msra.mxu0 0.0
    %168 = vmatpush.xpose.msra.mxu0 0.0
    %169 = vmatpush.xpose.msra.mxu0 0.0
    %170 = vmatpush.xpose.msra.mxu0 0.0
    %171 = vmatpush.xpose.msra.mxu0 0.0
    %172 = vmatpush.xpose.msra.mxu0 0.0
    %173 = vmatpush.xpose.msra.mxu0 %v157
    %174 = vmatpush.xpose.msra.mxu0 %v155
    %175 = vmatmul.f32.gmra.mxu0 %v151
    %v176 = vpop.f32.mrf.mxu0
    %v177 = vadd.f32 0.0, %v176
    %178 = vmatmul.f32.gmra.mxu0 %v153
    %v179 = vpop.f32.mrf.mxu0
    %v180 = vadd.f32 0.0, %v179
    %181 = vdwg.mxu0
    %v182 = vmul.f32 %v177, 0.35355338
    %v183 = vmul.f32 %v180, 0.35355338
    %v184 = vsel %vm140, %v182, %v142
    %v185 = vsel %vm141, %v183, %v143
    %vm186 = vcmask 130048
    %v187 = vsel %vm186, %v184, -inf
    %188 = vmax.xlane.f32.xlu0 %v187
    %v189 = vpop.xlane.xlu0 %188
    %v190 = vsel %vm186, %v185, -inf
    %191 = vmax.xlane.f32.xlu0 %v190
    %v192 = vpop.xlane.xlu0 %191
    %v193 = vsub.f32 %v184, %v189
    %v194 = vsub.f32 %v185, %v192
    %v195 = vmul.f32 %v193, 1.442695
    %v196 = vpow.pop %v195
    %v197 = vmul.f32 %v194, 1.442695
    %v198 = vpow.pop %v197
    %v199 = vsel %vm186, %v196, 0.0
    %200 = vadd.xlane.f32.xlu0 %v199
    %v201 = vpop.xlane.xlu0 %200
    %v202 = vsel %vm186, %v198, 0.0
    %203 = vadd.xlane.f32.xlu0 %v202
    %v204 = vpop.xlane.xlu0 %203
    %v205 = vrcp.pop %v201
    %v206 = vmul.f32 %v201, %v205
    %v207 = vsub.f32 1.0, %v206
    %v208 = vmul.f32 %v205, %v207
    %v209 = vadd.f32 %v205, %v208
    %vm210 = vweird.f32 %v201
    %vm211 = vweird.f32 %v205
    %vm212 = vmor %vm210, %vm211
    %v213 = vsel %vm212, %v205, %v209
    %v214 = vand.u32 2147483647, %v201
    %vm215 = vcmp.eq.f32.partialorder %v214, 8.507059e+37
    %v216 = vand.u32 %v201, 2147483648
    %v217 = vor.u32 1.1754944e-38, %v216
    %v218 = vsel %vm215, %v217, %v213
    %v219 = vmul.f32 %v196, %v218
    %v220 = vrcp.pop %v204
    %v221 = vmul.f32 %v204, %v220
    %v222 = vsub.f32 1.0, %v221
    %v223 = vmul.f32 %v220, %v222
    %v224 = vadd.f32 %v220, %v223
    %vm225 = vweird.f32 %v204
    %vm226 = vweird.f32 %v220
    %vm227 = vmor %vm225, %vm226
    %v228 = vsel %vm227, %v220, %v224
    %v229 = vand.u32 2147483647, %v204
    %vm230 = vcmp.eq.f32.partialorder %v229, 8.507059e+37
    %v231 = vand.u32 %v204, 2147483648
    %v232 = vor.u32 1.1754944e-38, %v231
    %v233 = vsel %vm230, %v232, %v228
    %v234 = vmul.f32 %v198, %v233
    %235 = vrot.lane.b32.xlu0 %v108, 64
    %v236 = vpop.permute.xlu0 %235
    %237 = vrot.lane.b32.xlu0 %v111, 64
    %v238 = vpop.permute.xlu0 %237
    %v242 = vsel %vm186, %v219, 0
    %v245 = vsel %vm186, %v234, 0
    %247 = vmatpush.msra.mxu0 0.0
    %248 = vmatpush.msra.mxu0 0.0
    %249 = vmatpush.msra.mxu0 0.0
    %250 = vmatpush.msra.mxu0 0.0
    %251 = vmatpush.msra.mxu0 0.0
    %252 = vmatpush.msra.mxu0 0.0
    %253 = vmatpush.msra.mxu0 0.0
    %254 = vmatpush.msra.mxu0 0.0
    %255 = vmatpush.msra.mxu0 0.0
    %256 = vmatpush.msra.mxu0 0.0
    %257 = vmatpush.msra.mxu0 0.0
    %258 = vmatpush.msra.mxu0 0.0
    %259 = vmatpush.msra.mxu0 0.0
    %260 = vmatpush.msra.mxu0 0.0
    %261 = vmatpush.msra.mxu0 %v238
    %262 = vmatpush.msra.mxu0 %v236
    %263 = vmatmul.f32.gmra.mxu0 %v242
    %v264 = vpop.f32.mrf.mxu0
    %v265 = vadd.f32 0.0, %v264
    %266 = vmatmul.f32.gmra.mxu0 %v245
    %v267 = vpop.f32.mrf.mxu0
    %v268 = vadd.f32 0.0, %v267
    %269 = vdwg.mxu0
    %270 = vrot.lane.b32.xlu0 %v108, 120
    %v271 = vpop.permute.xlu0 %270
    %272 = vrot.lane.b32.xlu0 %v111, 120
    %v273 = vpop.permute.xlu0 %272
    %274 = vrot.lane.b32.xlu0 %v108, 88
    %v275 = vpop.permute.xlu0 %274
    %276 = vrot.lane.b32.xlu0 %v111, 88
    %v277 = vpop.permute.xlu0 %276
    %v278 = vsel %vm150, %v271, 0
    %v280 = vsel %vm150, %v273, 0
    %v282 = vsel %vm150, %v275, 0
    %v284 = vsel %vm150, %v277, 0
    %286 = vmatpush.xpose.msra.mxu0 0.0
    %287 = vmatpush.xpose.msra.mxu0 0.0
    %288 = vmatpush.xpose.msra.mxu0 0.0
    %289 = vmatpush.xpose.msra.mxu0 0.0
    %290 = vmatpush.xpose.msra.mxu0 0.0
    %291 = vmatpush.xpose.msra.mxu0 0.0
    %292 = vmatpush.xpose.msra.mxu0 0.0
    %293 = vmatpush.xpose.msra.mxu0 0.0
    %294 = vmatpush.xpose.msra.mxu0 0.0
    %295 = vmatpush.xpose.msra.mxu0 0.0
    %296 = vmatpush.xpose.msra.mxu0 0.0
    %297 = vmatpush.xpose.msra.mxu0 0.0
    %298 = vmatpush.xpose.msra.mxu0 0.0
    %299 = vmatpush.xpose.msra.mxu0 0.0
    %300 = vmatpush.xpose.msra.mxu0 %v284
    %301 = vmatpush.xpose.msra.mxu0 %v282
    %302 = vmatmul.f32.gmra.mxu0 %v278
    %v303 = vpop.f32.mrf.mxu0
    %v304 = vadd.f32 0.0, %v303
    %305 = vmatmul.f32.gmra.mxu0 %v280
    %v306 = vpop.f32.mrf.mxu0
    %v307 = vadd.f32 0.0, %v306
    %308 = vdwg.mxu0
    %v309 = vmul.f32 %v304, 0.35355338
    %v310 = vmul.f32 %v307, 0.35355338
    %v311 = vsel %vm140, %v309, %v142
    %v312 = vsel %vm141, %v310, %v143
    %v313 = vsel %vm186, %v311, -inf
    %314 = vmax.xlane.f32.xlu0 %v313
    %v315 = vpop.xlane.xlu0 %314
    %v316 = vsel %vm186, %v312, -inf
    %317 = vmax.xlane.f32.xlu0 %v316
    %v318 = vpop.xlane.xlu0 %317
    %v319 = vsub.f32 %v311, %v315
    %v320 = vsub.f32 %v312, %v318
    %v321 = vmul.f32 %v319, 1.442695
    %v322 = vpow.pop %v321
    %v323 = vmul.f32 %v320, 1.442695
    %v324 = vpow.pop %v323
    %v325 = vsel %vm186, %v322, 0.0
    %326 = vadd.xlane.f32.xlu0 %v325
    %v327 = vpop.xlane.xlu0 %326
    %v328 = vsel %vm186, %v324, 0.0
    %329 = vadd.xlane.f32.xlu0 %v328
    %v330 = vpop.xlane.xlu0 %329
    %v331 = vrcp.pop %v327
    %v332 = vmul.f32 %v327, %v331
    %v333 = vsub.f32 1.0, %v332
    %v334 = vmul.f32 %v331, %v333
    %v335 = vadd.f32 %v331, %v334
    %vm336 = vweird.f32 %v327
    %vm337 = vweird.f32 %v331
    %vm338 = vmor %vm336, %vm337
    %v339 = vsel %vm338, %v331, %v335
    %v340 = vand.u32 2147483647, %v327
    %vm341 = vcmp.eq.f32.partialorder %v340, 8.507059e+37
    %v342 = vand.u32 %v327, 2147483648
    %v343 = vor.u32 1.1754944e-38, %v342
    %v344 = vsel %vm341, %v343, %v339
    %v345 = vmul.f32 %v322, %v344
    %v346 = vrcp.pop %v330
    %v347 = vmul.f32 %v330, %v346
    %v348 = vsub.f32 1.0, %v347
    %v349 = vmul.f32 %v346, %v348
    %v350 = vadd.f32 %v346, %v349
    %vm351 = vweird.f32 %v330
    %vm352 = vweird.f32 %v346
    %vm353 = vmor %vm351, %vm352
    %v354 = vsel %vm353, %v346, %v350
    %v355 = vand.u32 2147483647, %v330
    %vm356 = vcmp.eq.f32.partialorder %v355, 8.507059e+37
    %v357 = vand.u32 %v330, 2147483648
    %v358 = vor.u32 1.1754944e-38, %v357
    %v359 = vsel %vm356, %v358, %v354
    %v360 = vmul.f32 %v324, %v359
    %361 = vrot.lane.b32.xlu0 %v108, 56
    %v362 = vpop.permute.xlu0 %361
    %363 = vrot.lane.b32.xlu0 %v111, 56
    %v364 = vpop.permute.xlu0 %363
    %v368 = vsel %vm186, %v345, 0
    %v371 = vsel %vm186, %v360, 0
    %373 = vmatpush.msra.mxu0 0.0
    %374 = vmatpush.msra.mxu0 0.0
    %375 = vmatpush.msra.mxu0 0.0
    %376 = vmatpush.msra.mxu0 0.0
    %377 = vmatpush.msra.mxu0 0.0
    %378 = vmatpush.msra.mxu0 0.0
    %379 = vmatpush.msra.mxu0 0.0
    %380 = vmatpush.msra.mxu0 0.0
    %381 = vmatpush.msra.mxu0 0.0
    %382 = vmatpush.msra.mxu0 0.0
    %383 = vmatpush.msra.mxu0 0.0
    %384 = vmatpush.msra.mxu0 0.0
    %385 = vmatpush.msra.mxu0 0.0
    %386 = vmatpush.msra.mxu0 0.0
    %387 = vmatpush.msra.mxu0 %v364
    %388 = vmatpush.msra.mxu0 %v362
    %389 = vmatmul.f32.gmra.mxu0 %v368
    %v390 = vpop.f32.mrf.mxu0
    %v391 = vadd.f32 0.0, %v390
    %392 = vmatmul.f32.gmra.mxu0 %v371
    %v393 = vpop.f32.mrf.mxu0
    %v394 = vadd.f32 0.0, %v393
    %395 = vdwg.mxu0
    %396 = vrot.lane.b32.xlu0 %v108, 112
    %v397 = vpop.permute.xlu0 %396
    %398 = vrot.lane.b32.xlu0 %v111, 112
    %v399 = vpop.permute.xlu0 %398
    %400 = vrot.lane.b32.xlu0 %v108, 80
    %v401 = vpop.permute.xlu0 %400
    %402 = vrot.lane.b32.xlu0 %v111, 80
    %v403 = vpop.permute.xlu0 %402
    %v404 = vsel %vm150, %v397, 0
    %v406 = vsel %vm150, %v399, 0
    %v408 = vsel %vm150, %v401, 0
    %v410 = vsel %vm150, %v403, 0
    %412 = vmatpush.xpose.msra.mxu0 0.0
    %413 = vmatpush.xpose.msra.mxu0 0.0
    %414 = vmatpush.xpose.msra.mxu0 0.0
    %415 = vmatpush.xpose.msra.mxu0 0.0
    %416 = vmatpush.xpose.msra.mxu0 0.0
    %417 = vmatpush.xpose.msra.mxu0 0.0
    %418 = vmatpush.xpose.msra.mxu0 0.0
    %419 = vmatpush.xpose.msra.mxu0 0.0
    %420 = vmatpush.xpose.msra.mxu0 0.0
    %421 = vmatpush.xpose.msra.mxu0 0.0
    %422 = vmatpush.xpose.msra.mxu0 0.0
    %423 = vmatpush.xpose.msra.mxu0 0.0
    %424 = vmatpush.xpose.msra.mxu0 0.0
    %425 = vmatpush.xpose.msra.mxu0 0.0
    %426 = vmatpush.xpose.msra.mxu0 %v410
    %427 = vmatpush.xpose.msra.mxu0 %v408
    %428 = vmatmul.f32.gmra.mxu0 %v404
    %v429 = vpop.f32.mrf.mxu0
    %v430 = vadd.f32 0.0, %v429
    %431 = vmatmul.f32.gmra.mxu0 %v406
    %v432 = vpop.f32.mrf.mxu0
    %v433 = vadd.f32 0.0, %v432
    %434 = vdwg.mxu0
    %v435 = vmul.f32 %v430, 0.35355338
    %v436 = vmul.f32 %v433, 0.35355338
    %v437 = vsel %vm140, %v435, %v142
    %v438 = vsel %vm141, %v436, %v143
    %v439 = vsel %vm186, %v437, -inf
    %440 = vmax.xlane.f32.xlu0 %v439
    %v441 = vpop.xlane.xlu0 %440
    %v442 = vsel %vm186, %v438, -inf
    %443 = vmax.xlane.f32.xlu0 %v442
    %v444 = vpop.xlane.xlu0 %443
    %v445 = vsub.f32 %v437, %v441
    %v446 = vsub.f32 %v438, %v444
    %v447 = vmul.f32 %v445, 1.442695
    %v448 = vpow.pop %v447
    %v449 = vmul.f32 %v446, 1.442695
    %v450 = vpow.pop %v449
    %v451 = vsel %vm186, %v448, 0.0
    %452 = vadd.xlane.f32.xlu0 %v451
    %v453 = vpop.xlane.xlu0 %452
    %v454 = vsel %vm186, %v450, 0.0
    %455 = vadd.xlane.f32.xlu0 %v454
    %v456 = vpop.xlane.xlu0 %455
    %v457 = vrcp.pop %v453
    %v458 = vmul.f32 %v453, %v457
    %v459 = vsub.f32 1.0, %v458
    %v460 = vmul.f32 %v457, %v459
    %v461 = vadd.f32 %v457, %v460
    %vm462 = vweird.f32 %v453
    %vm463 = vweird.f32 %v457
    %vm464 = vmor %vm462, %vm463
    %v465 = vsel %vm464, %v457, %v461
    %v466 = vand.u32 2147483647, %v453
    %vm467 = vcmp.eq.f32.partialorder %v466, 8.507059e+37
    %v468 = vand.u32 %v453, 2147483648
    %v469 = vor.u32 1.1754944e-38, %v468
    %v470 = vsel %vm467, %v469, %v465
    %v471 = vmul.f32 %v448, %v470
    %v472 = vrcp.pop %v456
    %v473 = vmul.f32 %v456, %v472
    %v474 = vsub.f32 1.0, %v473
    %v475 = vmul.f32 %v472, %v474
    %v476 = vadd.f32 %v472, %v475
    %vm477 = vweird.f32 %v456
    %vm478 = vweird.f32 %v472
    %vm479 = vmor %vm477, %vm478
    %v480 = vsel %vm479, %v472, %v476
    %v481 = vand.u32 2147483647, %v456
    %vm482 = vcmp.eq.f32.partialorder %v481, 8.507059e+37
    %v483 = vand.u32 %v456, 2147483648
    %v484 = vor.u32 1.1754944e-38, %v483
    %v485 = vsel %vm482, %v484, %v480
    %v486 = vmul.f32 %v450, %v485
    %487 = vrot.lane.b32.xlu0 %v108, 48
    %v488 = vpop.permute.xlu0 %487
    %489 = vrot.lane.b32.xlu0 %v111, 48
    %v490 = vpop.permute.xlu0 %489
    %v494 = vsel %vm186, %v471, 0
    %v497 = vsel %vm186, %v486, 0
    %499 = vmatpush.msra.mxu0 0.0
    %500 = vmatpush.msra.mxu0 0.0
    %501 = vmatpush.msra.mxu0 0.0
    %502 = vmatpush.msra.mxu0 0.0
    %503 = vmatpush.msra.mxu0 0.0
    %504 = vmatpush.msra.mxu0 0.0
    %505 = vmatpush.msra.mxu0 0.0
    %506 = vmatpush.msra.mxu0 0.0
    %507 = vmatpush.msra.mxu0 0.0
    %508 = vmatpush.msra.mxu0 0.0
    %509 = vmatpush.msra.mxu0 0.0
    %510 = vmatpush.msra.mxu0 0.0
    %511 = vmatpush.msra.mxu0 0.0
    %512 = vmatpush.msra.mxu0 0.0
    %513 = vmatpush.msra.mxu0 %v490
    %514 = vmatpush.msra.mxu0 %v488
    %515 = vmatmul.f32.gmra.mxu0 %v494
    %v516 = vpop.f32.mrf.mxu0
    %v517 = vadd.f32 0.0, %v516
    %518 = vmatmul.f32.gmra.mxu0 %v497
    %v519 = vpop.f32.mrf.mxu0
    %v520 = vadd.f32 0.0, %v519
    %521 = vdwg.mxu0
    %522 = vrot.lane.b32.xlu0 %v108, 104
    %v523 = vpop.permute.xlu0 %522
    %524 = vrot.lane.b32.xlu0 %v111, 104
    %v525 = vpop.permute.xlu0 %524
    %526 = vrot.lane.b32.xlu0 %v108, 72
    %v527 = vpop.permute.xlu0 %526
    %528 = vrot.lane.b32.xlu0 %v111, 72
    %v529 = vpop.permute.xlu0 %528
    %v530 = vsel %vm150, %v523, 0
    %v532 = vsel %vm150, %v525, 0
    %v534 = vsel %vm150, %v527, 0
    %v536 = vsel %vm150, %v529, 0
    %538 = vmatpush.xpose.msra.mxu0 0.0
    %539 = vmatpush.xpose.msra.mxu0 0.0
    %540 = vmatpush.xpose.msra.mxu0 0.0
    %541 = vmatpush.xpose.msra.mxu0 0.0
    %542 = vmatpush.xpose.msra.mxu0 0.0
    %543 = vmatpush.xpose.msra.mxu0 0.0
    %544 = vmatpush.xpose.msra.mxu0 0.0
    %545 = vmatpush.xpose.msra.mxu0 0.0
    %546 = vmatpush.xpose.msra.mxu0 0.0
    %547 = vmatpush.xpose.msra.mxu0 0.0
    %548 = vmatpush.xpose.msra.mxu0 0.0
    %549 = vmatpush.xpose.msra.mxu0 0.0
    %550 = vmatpush.xpose.msra.mxu0 0.0
    %551 = vmatpush.xpose.msra.mxu0 0.0
    %552 = vmatpush.xpose.msra.mxu0 %v536
    %553 = vmatpush.xpose.msra.mxu0 %v534
    %554 = vmatmul.f32.gmra.mxu0 %v530
    %v555 = vpop.f32.mrf.mxu0
    %v556 = vadd.f32 0.0, %v555
    %557 = vmatmul.f32.gmra.mxu0 %v532
    %v558 = vpop.f32.mrf.mxu0
    %v559 = vadd.f32 0.0, %v558
    %560 = vdwg.mxu0
    %v561 = vmul.f32 %v556, 0.35355338
    %v562 = vmul.f32 %v559, 0.35355338
    %v563 = vsel %vm140, %v561, %v142
    %v564 = vsel %vm141, %v562, %v143
    %v565 = vsel %vm186, %v563, -inf
    %566 = vmax.xlane.f32.xlu0 %v565
    %v567 = vpop.xlane.xlu0 %566
    %v568 = vsel %vm186, %v564, -inf
    %569 = vmax.xlane.f32.xlu0 %v568
    %v570 = vpop.xlane.xlu0 %569
    %v571 = vsub.f32 %v563, %v567
    %v572 = vsub.f32 %v564, %v570
    %v573 = vmul.f32 %v571, 1.442695
    %v574 = vpow.pop %v573
    %v575 = vmul.f32 %v572, 1.442695
    %v576 = vpow.pop %v575
    %v577 = vsel %vm186, %v574, 0.0
    %578 = vadd.xlane.f32.xlu0 %v577
    %v579 = vpop.xlane.xlu0 %578
    %v580 = vsel %vm186, %v576, 0.0
    %581 = vadd.xlane.f32.xlu0 %v580
    %v582 = vpop.xlane.xlu0 %581
    %v583 = vrcp.pop %v579
    %v584 = vmul.f32 %v579, %v583
    %v585 = vsub.f32 1.0, %v584
    %v586 = vmul.f32 %v583, %v585
    %v587 = vadd.f32 %v583, %v586
    %vm588 = vweird.f32 %v579
    %vm589 = vweird.f32 %v583
    %vm590 = vmor %vm588, %vm589
    %v591 = vsel %vm590, %v583, %v587
    %v592 = vand.u32 2147483647, %v579
    %vm593 = vcmp.eq.f32.partialorder %v592, 8.507059e+37
    %v594 = vand.u32 %v579, 2147483648
    %v595 = vor.u32 1.1754944e-38, %v594
    %v596 = vsel %vm593, %v595, %v591
    %v597 = vmul.f32 %v574, %v596
    %v598 = vrcp.pop %v582
    %v599 = vmul.f32 %v582, %v598
    %v600 = vsub.f32 1.0, %v599
    %v601 = vmul.f32 %v598, %v600
    %v602 = vadd.f32 %v598, %v601
    %vm603 = vweird.f32 %v582
    %vm604 = vweird.f32 %v598
    %vm605 = vmor %vm603, %vm604
    %v606 = vsel %vm605, %v598, %v602
    %v607 = vand.u32 2147483647, %v582
    %vm608 = vcmp.eq.f32.partialorder %v607, 8.507059e+37
    %v609 = vand.u32 %v582, 2147483648
    %v610 = vor.u32 1.1754944e-38, %v609
    %v611 = vsel %vm608, %v610, %v606
    %v612 = vmul.f32 %v576, %v611
    %613 = vrot.lane.b32.xlu0 %v108, 40
    %v614 = vpop.permute.xlu0 %613
    %615 = vrot.lane.b32.xlu0 %v111, 40
    %v616 = vpop.permute.xlu0 %615
    %v620 = vsel %vm186, %v597, 0
    %v623 = vsel %vm186, %v612, 0
    %625 = vmatpush.msra.mxu0 0.0
    %626 = vmatpush.msra.mxu0 0.0
    %627 = vmatpush.msra.mxu0 0.0
    %628 = vmatpush.msra.mxu0 0.0
    %629 = vmatpush.msra.mxu0 0.0
    %630 = vmatpush.msra.mxu0 0.0
    %631 = vmatpush.msra.mxu0 0.0
    %632 = vmatpush.msra.mxu0 0.0
    %633 = vmatpush.msra.mxu0 0.0
    %634 = vmatpush.msra.mxu0 0.0
    %635 = vmatpush.msra.mxu0 0.0
    %636 = vmatpush.msra.mxu0 0.0
    %637 = vmatpush.msra.mxu0 0.0
    %638 = vmatpush.msra.mxu0 0.0
    %639 = vmatpush.msra.mxu0 %v616
    %640 = vmatpush.msra.mxu0 %v614
    %641 = vmatmul.f32.gmra.mxu0 %v620
    %v642 = vpop.f32.mrf.mxu0
    %v643 = vadd.f32 0.0, %v642
    %644 = vmatmul.f32.gmra.mxu0 %v623
    %v645 = vpop.f32.mrf.mxu0
    %v646 = vadd.f32 0.0, %v645
    %647 = vdwg.mxu0
    %650 = vrot.lane.b32.xlu0 %v391, 8
    %v651 = vpop.permute.xlu0 %650
    %652 = vrot.lane.b32.xlu0 %v394, 8
    %v653 = vpop.permute.xlu0 %652
    %658 = vrot.lane.b32.xlu0 %v517, 16
    %v659 = vpop.permute.xlu0 %658
    %660 = vrot.lane.b32.xlu0 %v520, 16
    %v661 = vpop.permute.xlu0 %660
    %666 = vrot.lane.b32.xlu0 %v643, 24
    %v667 = vpop.permute.xlu0 %666
    %668 = vrot.lane.b32.xlu0 %v646, 24
    %v669 = vpop.permute.xlu0 %668
    %v672 = vsel %vm150, %v265, %v651
    %v673 = vsel %vm150, %v268, %v653
    %v674 = vsel %vm186, %v672, %v659
    %v675 = vsel %vm186, %v673, %v661
    %vm676 = vcmask 195584
    %v677 = vsel %vm676, %v674, %v667
    %v678 = vsel %vm676, %v675, %v669
    %v680 = vsel %vm83, %v677, 0
    %v683 = vsel %vm83, %v678, 0
    %685 = vmatpush.msra.mxu0 0.0
    %686 = vmatpush.msra.mxu0 0.0
    %687 = vmatpush.msra.mxu0 0.0
    %688 = vmatpush.msra.mxu0 0.0
    %689 = vmatpush.msra.mxu0 0.0
    %690 = vmatpush.msra.mxu0 0.0
    %691 = vmatpush.msra.mxu0 0.0
    %692 = vmatpush.msra.mxu0 0.0
    %693 = vmatpush.msra.mxu0 0.0
    %694 = vmatpush.msra.mxu0 0.0
    %695 = vmatpush.msra.mxu0 0.0
    %696 = vmatpush.msra.mxu0 0.0
    %697 = vmatpush.msra.mxu0 %v69
    %698 = vmatpush.msra.mxu0 %v68
    %699 = vmatpush.msra.mxu0 %v67
    %700 = vmatpush.msra.mxu0 %v66
    %701 = vmatmul.f32.gmra.mxu0 %v680
    %v702 = vpop.f32.mrf.mxu0
    %v703 = vadd.f32 %v60, %v702
    %704 = vmatmul.f32.gmra.mxu0 %v683
    %v705 = vpop.f32.mrf.mxu0
    %v706 = vadd.f32 %v61, %v705
    %707 = vdwg.mxu0
    %v708 = vsel %vm83, %v703, 0.0
    %709 = vadd.xlane.f32.xlu0 %v708
    %v710 = vpop.xlane.xlu0 %709
    %v711 = vsel %vm83, %v706, 0.0
    %712 = vadd.xlane.f32.xlu0 %v711
    %v713 = vpop.xlane.xlu0 %712
    %v714 = vrcp.pop 32.0
    %v715 = vmul.f32 32.0, %v714
    %v716 = vsub.f32 1.0, %v715
    %v717 = vmul.f32 %v714, %v716
    %v718 = vadd.f32 %v714, %v717
    %vm719 = vweird.f32 %v714
    %v720 = vsel %vm719, %v714, %v718
    %v721 = vmul.f32 %v710, %v720
    %v722 = vmul.f32 %v713, %v720
    %v723 = vsub.f32 %v703, %v721
    %v724 = vsub.f32 %v706, %v722
    %v725 = vmul.f32 %v723, %v723
    %v726 = vmul.f32 %v724, %v724
    %v727 = vsel %vm83, %v725, 0.0
    %728 = vadd.xlane.f32.xlu0 %v727
    %v729 = vpop.xlane.xlu0 %728
    %v730 = vsel %vm83, %v726, 0.0
    %731 = vadd.xlane.f32.xlu0 %v730
    %v732 = vpop.xlane.xlu0 %731
    %v733 = vmul.f32 %v729, %v720
    %v734 = vmul.f32 %v732, %v720
    %v735 = vadd.f32 %v733, 1e-05
    %v736 = vadd.f32 %v734, 1e-05
    %v737 = vrsqrt.pop %v735
    %v738 = vmul.f32 %v737, %v735
    %v739 = vmul.f32 %v738, %v737
    %v740 = vmul.f32 0.5, %v739
    %v741 = vsub.f32 1.5, %v740
    %v742 = vmul.f32 %v737, %v741
    %vm743 = vweird.f32 %v735
    %vm744 = vweird.f32 %v737
    %vm745 = vmor %vm743, %vm744
    %v746 = vsel %vm745, %v737, %v742
    %v747 = vrsqrt.pop %v736
    %v748 = vmul.f32 %v747, %v736
    %v749 = vmul.f32 %v748, %v747
    %v750 = vmul.f32 0.5, %v749
    %v751 = vsub.f32 1.5, %v750
    %v752 = vmul.f32 %v747, %v751
    %vm753 = vweird.f32 %v736
    %vm754 = vweird.f32 %v747
    %vm755 = vmor %vm753, %vm754
    %v756 = vsel %vm755, %v747, %v752
    %v757 = vmul.f32 %v723, %v746
    %v758 = vmul.f32 %v724, %v756
    %v759 = vperm.slane %v82, 0
    %v760 = vmul.f32 %v757, %v759
    %v761 = vmul.f32 %v758, %v759
    %v762 = vperm.slane %v82, 1
    %v763 = vadd.f32 %v760, %v762
    %v764 = vadd.f32 %v761, %v762
    %v765 = vperm.slane %v82, 5
    %v767 = vsel %vm83, %v763, 0
    %v770 = vsel %vm83, %v764, 0
    %772 = vmatpush.msra.mxu0 0.0
    %773 = vmatpush.msra.mxu0 0.0
    %774 = vmatpush.msra.mxu0 0.0
    %775 = vmatpush.msra.mxu0 0.0
    %776 = vmatpush.msra.mxu0 0.0
    %777 = vmatpush.msra.mxu0 0.0
    %778 = vmatpush.msra.mxu0 0.0
    %779 = vmatpush.msra.mxu0 0.0
    %780 = vmatpush.msra.mxu0 0.0
    %781 = vmatpush.msra.mxu0 0.0
    %782 = vmatpush.msra.mxu0 0.0
    %783 = vmatpush.msra.mxu0 0.0
    %784 = vmatpush.msra.mxu0 %v73
    %785 = vmatpush.msra.mxu0 %v72
    %786 = vmatpush.msra.mxu0 %v71
    %787 = vmatpush.msra.mxu0 %v70
    %788 = vmatmul.f32.gmra.mxu0 %v767
    %v789 = vpop.f32.mrf.mxu0
    %v790 = vadd.f32 %v765, %v789
    %791 = vmatmul.f32.gmra.mxu0 %v770
    %v792 = vpop.f32.mrf.mxu0
    %v793 = vadd.f32 %v765, %v792
    %794 = vdwg.mxu0
    %v795 = vmax.f32 %v790, 0.0
    %v796 = vmax.f32 %v793, 0.0
    %v797 = vperm.slane %v82, 4
    %vm798 = vcmask 523264
    %v800 = vsel %vm798, %v795, 0
    %v803 = vsel %vm798, %v796, 0
    %805 = vmatpush.msra.mxu0 0.0
    %806 = vmatpush.msra.mxu0 0.0
    %807 = vmatpush.msra.mxu0 0.0
    %808 = vmatpush.msra.mxu0 0.0
    %809 = vmatpush.msra.mxu0 0.0
    %810 = vmatpush.msra.mxu0 0.0
    %811 = vmatpush.msra.mxu0 0.0
    %812 = vmatpush.msra.mxu0 0.0
    %813 = vmatpush.msra.mxu0 %v81
    %814 = vmatpush.msra.mxu0 %v80
    %815 = vmatpush.msra.mxu0 %v79
    %816 = vmatpush.msra.mxu0 %v78
    %817 = vmatpush.msra.mxu0 %v77
    %818 = vmatpush.msra.mxu0 %v76
    %819 = vmatpush.msra.mxu0 %v75
    %820 = vmatpush.msra.mxu0 %v74
    %821 = vmatmul.f32.gmra.mxu0 %v800
    %v822 = vpop.f32.mrf.mxu0
    %v823 = vadd.f32 %v797, %v822
    %824 = vmatmul.f32.gmra.mxu0 %v803
    %v825 = vpop.f32.mrf.mxu0
    %v826 = vadd.f32 %v797, %v825
    %827 = vdwg.mxu0
    %v828 = vadd.f32 %v823, %v763
    %v829 = vadd.f32 %v826, %v764
    %v830 = vsel %vm83, %v828, 0.0
    %831 = vadd.xlane.f32.xlu0 %v830
    %v832 = vpop.xlane.xlu0 %831
    %v833 = vsel %vm83, %v829, 0.0
    %834 = vadd.xlane.f32.xlu0 %v833
    %v835 = vpop.xlane.xlu0 %834
    %v836 = vmul.f32 %v832, %v720
    %v837 = vmul.f32 %v835, %v720
    %v838 = vsub.f32 %v828, %v836
    %v839 = vsub.f32 %v829, %v837
    %v840 = vmul.f32 %v838, %v838
    %v841 = vmul.f32 %v839, %v839
    %v842 = vsel %vm83, %v840, 0.0
    %843 = vadd.xlane.f32.xlu0 %v842
    %v844 = vpop.xlane.xlu0 %843
    %v845 = vsel %vm83, %v841, 0.0
    %846 = vadd.xlane.f32.xlu0 %v845
    %v847 = vpop.xlane.xlu0 %846
    %v848 = vmul.f32 %v844, %v720
    %v849 = vmul.f32 %v847, %v720
    %v850 = vadd.f32 %v848, 1e-05
    %v851 = vadd.f32 %v849, 1e-05
    %v852 = vrsqrt.pop %v850
    %v853 = vmul.f32 %v852, %v850
    %v854 = vmul.f32 %v853, %v852
    %v855 = vmul.f32 0.5, %v854
    %v856 = vsub.f32 1.5, %v855
    %v857 = vmul.f32 %v852, %v856
    %vm858 = vweird.f32 %v850
    %vm859 = vweird.f32 %v852
    %vm860 = vmor %vm858, %vm859
    %v861 = vsel %vm860, %v852, %v857
    %v862 = vrsqrt.pop %v851
    %v863 = vmul.f32 %v862, %v851
    %v864 = vmul.f32 %v863, %v862
    %v865 = vmul.f32 0.5, %v864
    %v866 = vsub.f32 1.5, %v865
    %v867 = vmul.f32 %v862, %v866
    %vm868 = vweird.f32 %v851
    %vm869 = vweird.f32 %v862
    %vm870 = vmor %vm868, %vm869
    %v871 = vsel %vm870, %v862, %v867
    %v872 = vmul.f32 %v838, %v861
    %v873 = vmul.f32 %v839, %v871
    %v874 = vperm.slane %v82, 2
    %v875 = vmul.f32 %v872, %v874
    %v876 = vmul.f32 %v873, %v874
    %v877 = vperm.slane %v82, 3
    %v878 = vadd.f32 %v875, %v877
    %v879 = vadd.f32 %v876, %v877
    %880 = vst.msk [vmem:[#allocation9] sm:$0xff] %vm83, %v878
    %881 = vst.msk [vmem:[#allocation9 + $0x8] sm:$0xff] %vm83, %v879
    // Predicated region
    $region26: #{encoder_block.1} parent=1 // pred_check
      _
    $region27: #{encoder_block.1} parent=1 // pred_check_branch
      %883 = sbr.rel (0) target = $region29
    $region28: #{encoder_block.1} parent=1 // pred_region
      %885 = vsyncadd [#allocation4], 0
      %s886 = sshll.u32 [#allocation9], 4
      %s887 = int_to_ptr.vmem [resolvable:$true] %s886
      %s888 = sshll.u32 %s3, 4
      %s889 = int_to_ptr.hbm [resolvable:$true] %s888
      %894 = dma.vmem_to_hbm [thread:$0]  %s887, 256, %s889, [#allocation4], 128, 128, 8
    $region29: #{encoder_block.1} parent=1 // pred_fallthru
      _
    // Predicated region
    $region30: #{encoder_block.1} parent=1 // pred_check
      _
    $region31: #{encoder_block.1} parent=1 // pred_check_branch
      %896 = sbr.rel (0) target = $region33
    $region32: #{encoder_block.1} parent=1 // pred_region
      %898 = dma.done [#allocation4], 256
    $region33: #{encoder_block.1} parent=1 // pred_fallthru
      _
    %899 = vsyncpa [#allocation3], 1
    %900 = vsyncpa [#allocation8], 1
    %901 = vsyncpa [#allocation4], 1
    %902 = vsyncpa [#allocation5], 1

</llo_original>
